<compile_context>
chip_gen: v7x
topology: tpu7x:2x2x1
jax: 0.10.0
libtpu: 0.0.40
codegen_flags: <defaults>
</compile_context>

<pallas_src>
import jax
import jax.numpy as jnp
from jax.experimental import pallas as pl
from jax.experimental.pallas import tpu as pltpu

HID = 32      # hid_dim
PF_DIM = 64   # pf_dim


def _round_up(n: int, m: int) -> int:
    return ((n + m - 1) // m) * m


# ---------------------------------------------------------------------------
# Pallas kernel: one row-tile per grid step, channels-first (lane-dense) layout.
#   x_ref : [H,  TM] bf16      w1_ref: [PF, H] bf16   b1_ref: [PF, 1] f32
#   o_ref : [H,  TM] f32       w2_ref: [H, PF] bf16   b2_ref: [H, 1]  f32
# ---------------------------------------------------------------------------
def ffn_kernel(x_ref, w1_ref, b1_ref, w2_ref, b2_ref, o_ref):
    xt = x_ref[...]                                                  # [H, TM] bf16
    # fc_1 + bias + ReLU, accumulated and activated in f32 (v5e-safe).
    h = jnp.dot(w1_ref[...], xt, preferred_element_type=jnp.float32) + b1_ref[...]
    h = jnp.maximum(h, 0.0)                                          # [PF, TM] f32
    # TODO(synk): dropout identity (inference).
    # fc_2 + bias; second matmul operands back in bf16, f32 accumulation.
    y = jnp.dot(w2_ref[...], h.astype(jnp.bfloat16),
                preferred_element_type=jnp.float32) + b2_ref[...]    # [H, TM] f32
    o_ref[...] = y.astype(o_ref.dtype)


def positionwise_feedforward(x, fc1_w, fc1_b, fc2_w, fc2_b, *, tm: int = 1024):
    """Forward pass of PositionwiseFeedforward.

    x      : [B, L, H]   float32
    fc1_w  : [PF, H, 1]  Conv1d(hid, pf, 1) weight (native PyTorch layout)
    fc1_b  : [PF]
    fc2_w  : [H, PF, 1]  Conv1d(pf, hid, 1) weight
    fc2_b  : [H]
    returns [B, L, H]    float32
    """
    B, L, H = x.shape
    PF = fc1_w.shape[0]
    rows = B * L

    # Row tile: lane-dense (multiple of 128), clamped for tiny inputs.
    tm = min(tm, _round_up(rows, 128))
    assert tm % 128 == 0
    rows_p = _round_up(rows, tm)
    grid = (rows_p // tm,)

    # Flatten batch into the row dimension, zero-pad to a whole number of tiles,
    # and go channels-first.  (In a full-model integration this transpose cancels
    # with the module's x.permute(0, 2, 1).)  Activation HBM traffic is bf16.
    x2 = x.reshape(rows, H)
    if rows_p != rows:
        x2 = jnp.pad(x2, ((0, rows_p - rows), (0, 0)))
    xt = x2.T.astype(jnp.bfloat16)                    # [H, rows_p]

    # Conv1d weights are already (out_ch, in_ch) once the trailing k=1 is dropped,
    # which is exactly the channels-first matmul layout.  Biases stay f32.
    w1t = fc1_w[:, :, 0].astype(jnp.bfloat16)         # [PF, H]
    w2t = fc2_w[:, :, 0].astype(jnp.bfloat16)         # [H, PF]
    b1 = fc1_b.reshape(PF, 1).astype(jnp.float32)
    b2 = fc2_b.reshape(H, 1).astype(jnp.float32)

    out_t = pl.pallas_call(
        ffn_kernel,
        out_shape=jax.ShapeDtypeStruct((H, rows_p), jnp.float32),
        grid=grid,
        in_specs=[
            pl.BlockSpec((H, tm), lambda j: (0, j)),          # x tile (pipelined)
            pl.BlockSpec(w1t.shape, lambda j: (0, 0)),        # weights resident
            pl.BlockSpec(b1.shape, lambda j: (0, 0)),
            pl.BlockSpec(w2t.shape, lambda j: (0, 0)),
            pl.BlockSpec(b2.shape, lambda j: (0, 0)),
        ],
        out_specs=pl.BlockSpec((H, tm), lambda j: (0, j)),    # lane-dense output
        compiler_params=pltpu.CompilerParams(
            dimension_semantics=("parallel",)),               # megacore on v7x
    )(xt, w1t, b1, w2t, b2)

    return out_t.T[:rows].reshape(B, L, H)


# ---------------------------------------------------------------------------
# Pure-JAX f32 reference (same math) for a correctness check.
# ---------------------------------------------------------------------------
def positionwise_feedforward_ref(x, fc1_w, fc1_b, fc2_w, fc2_b):
    w1 = fc1_w[:, :, 0].T            # [H, PF]
    w2 = fc2_w[:, :, 0].T            # [PF, H]
    h = jnp.maximum(jnp.dot(x, w1) + fc1_b, 0.0)
    return jnp.dot(h, w2) + fc2_b


if __name__ == "__main__":
    key = jax.random.PRNGKey(0)
    k_x, k_w1, k_b1, k_w2, k_b2 = jax.random.split(key, 5)

    B, L = 2, 8
    x = jax.random.normal(k_x, (B, L, HID), jnp.float32)
    # Conv1d weights in their native (out_ch, in_ch, kernel=1) layout.
    fc1_w = 0.1 * jax.random.normal(k_w1, (PF_DIM, HID, 1), jnp.float32)
    fc1_b = 0.1 * jax.random.normal(k_b1, (PF_DIM,), jnp.float32)
    fc2_w = 0.1 * jax.random.normal(k_w2, (HID, PF_DIM, 1), jnp.float32)
    fc2_b = 0.1 * jax.random.normal(k_b2, (HID,), jnp.float32)

    out = jax.block_until_ready(
        positionwise_feedforward(x, fc1_w, fc1_b, fc2_w, fc2_b))
    ref = jax.block_until_ready(
        positionwise_feedforward_ref(x, fc1_w, fc1_b, fc2_w, fc2_b))

    assert out.shape == (B, L, HID)
    # Tolerance loosened vs pure-f32 path: activations/weights travel as bf16,
    # accumulation is f32.
    assert jnp.allclose(out, ref, atol=3e-2, rtol=3e-2), "kernel/reference mismatch"

    print("KERNEL_OK")
</pallas_src>

<mosaic_0001>
module attributes {stable_mosaic.version = 11 : i64} {
  func.func @ffn_kernel(%arg0: i32, %arg1: memref<32x128xbf16, #tpu.memory_space<vmem>>, %arg2: memref<64x32xbf16, #tpu.memory_space<vmem>>, %arg3: memref<64x1xf32, #tpu.memory_space<vmem>>, %arg4: memref<32x64xbf16, #tpu.memory_space<vmem>>, %arg5: memref<32x1xf32, #tpu.memory_space<vmem>>, %arg6: memref<32x128xf32, #tpu.memory_space<vmem>>) attributes {dimension_semantics = [#tpu.dimension_semantics<parallel>], iteration_bounds = array<i64: 1>, scalar_prefetch = 0 : i64, scratch_operands = 0 : i64, tpu.core_type = #tpu.core_type<tc>, window_params = [{transform_indices = @transform_0, window_bounds = array<i64: 32, 128>}, {pipeline_mode = #tpu.pipeline_mode<synchronous>, transform_indices = @transform_1, window_bounds = array<i64: 64, 32>}, {pipeline_mode = #tpu.pipeline_mode<synchronous>, transform_indices = @transform_2, window_bounds = array<i64: 64, 1>}, {pipeline_mode = #tpu.pipeline_mode<synchronous>, transform_indices = @transform_3, window_bounds = array<i64: 32, 64>}, {pipeline_mode = #tpu.pipeline_mode<synchronous>, transform_indices = @transform_4, window_bounds = array<i64: 32, 1>}, {transform_indices = @transform_5, window_bounds = array<i64: 32, 128>}]} {
    %c0 = arith.constant 0 : index
    %c0_0 = arith.constant 0 : index
    %0 = vector.load %arg1[%c0, %c0_0] : memref<32x128xbf16, #tpu.memory_space<vmem>>, vector<32x128xbf16>
    %c0_1 = arith.constant 0 : index
    %c0_2 = arith.constant 0 : index
    %1 = vector.load %arg2[%c0_1, %c0_2] : memref<64x32xbf16, #tpu.memory_space<vmem>>, vector<64x32xbf16>
    %cst = arith.constant dense<0.000000e+00> : vector<64x128xf32>
    %2 = tpu.matmul %1, %0, %cst {dimension_numbers = #tpu.dot_dimension_numbers<[1], [0], [0], [1], [0, 0, 1, 1], [], []>} : vector<64x32xbf16>, vector<32x128xbf16>, vector<64x128xf32> -> vector<64x128xf32>
    %c0_3 = arith.constant 0 : index
    %c0_4 = arith.constant 0 : index
    %3 = vector.load %arg3[%c0_3, %c0_4] : memref<64x1xf32, #tpu.memory_space<vmem>>, vector<64x1xf32>
    %4 = vector.broadcast %3 : vector<64x1xf32> to vector<64x128xf32>
    %5 = arith.addf %2, %4 : vector<64x128xf32>
    %cst_5 = arith.constant 0.000000e+00 : f32
    %6 = vector.broadcast %cst_5 : f32 to vector<64x128xf32>
    %7 = arith.maximumf %5, %6 : vector<64x128xf32>
    %c0_6 = arith.constant 0 : index
    %c0_7 = arith.constant 0 : index
    %8 = vector.load %arg4[%c0_6, %c0_7] : memref<32x64xbf16, #tpu.memory_space<vmem>>, vector<32x64xbf16>
    %9 = arith.truncf %7 : vector<64x128xf32> to vector<64x128xbf16>
    %cst_8 = arith.constant dense<0.000000e+00> : vector<32x128xf32>
    %10 = tpu.matmul %8, %9, %cst_8 {dimension_numbers = #tpu.dot_dimension_numbers<[1], [0], [0], [1], [0, 0, 1, 1], [], []>} : vector<32x64xbf16>, vector<64x128xbf16>, vector<32x128xf32> -> vector<32x128xf32>
    %c0_9 = arith.constant 0 : index
    %c0_10 = arith.constant 0 : index
    %11 = vector.load %arg5[%c0_9, %c0_10] : memref<32x1xf32, #tpu.memory_space<vmem>>, vector<32x1xf32>
    %12 = vector.broadcast %11 : vector<32x1xf32> to vector<32x128xf32>
    %13 = arith.addf %10, %12 : vector<32x128xf32>
    %c0_11 = arith.constant 0 : index
    %c0_12 = arith.constant 0 : index
    %14 = vector.load %arg6[%c0_11, %c0_12] : memref<32x128xf32, #tpu.memory_space<vmem>>, vector<32x128xf32>
    tpu.vector_store %arg6[%c0_11, %c0_12], %13 {strides = array<i32>} : memref<32x128xf32, #tpu.memory_space<vmem>>, vector<32x128xf32>,
    return
  }
  func.func @transform_0(%arg0: i32) -> (i32, i32) {
    %c0_i32 = arith.constant 0 : i32
    %c0_i32_0 = arith.constant 0 : i32
    return %c0_i32, %arg0 : i32, i32
  }
  func.func @transform_1(%arg0: i32) -> (i32, i32) {
    %c0_i32 = arith.constant 0 : i32
    %c0_i32_0 = arith.constant 0 : i32
    %c0_i32_1 = arith.constant 0 : i32
    return %c0_i32, %c0_i32_0 : i32, i32
  }
  func.func @transform_2(%arg0: i32) -> (i32, i32) {
    %c0_i32 = arith.constant 0 : i32
    %c0_i32_0 = arith.constant 0 : i32
    %c0_i32_1 = arith.constant 0 : i32
    return %c0_i32, %c0_i32_0 : i32, i32
  }
  func.func @transform_3(%arg0: i32) -> (i32, i32) {
    %c0_i32 = arith.constant 0 : i32
    %c0_i32_0 = arith.constant 0 : i32
    %c0_i32_1 = arith.constant 0 : i32
    return %c0_i32, %c0_i32_0 : i32, i32
  }
  func.func @transform_4(%arg0: i32) -> (i32, i32) {
    %c0_i32 = arith.constant 0 : i32
    %c0_i32_0 = arith.constant 0 : i32
    %c0_i32_1 = arith.constant 0 : i32
    return %c0_i32, %c0_i32_0 : i32, i32
  }
  func.func @transform_5(%arg0: i32) -> (i32, i32) {
    %c0_i32 = arith.constant 0 : i32
    %c0_i32_0 = arith.constant 0 : i32
    return %c0_i32, %arg0 : i32, i32
  }
}

</mosaic_0001>

<llo_original>
// kernel: tpu_custom_call.1
$region0: #{tpu_custom_call.1}
  #allocation0 [shape = 'u32[]', space=smem, size = 0x4, offset = 0x4, fixed_abs, tag = 'smem constant byte address 0x4 - core index']
  #allocation1 [shape = 'u32[144,128]{1,0:T(1,128)}', space=vmem, size = 0x12000, scoped, tag = 'internal scratch']
  %s0 = inlined_call_operand.vmem [shape: bf16[32,128], index: 0, kind: input, shape index: {}]
  %s1 = inlined_call_operand.vmem [shape: bf16[64,32], index: 1, kind: input, shape index: {}]
  %s2 = inlined_call_operand.vmem [shape: f32[64,1], index: 2, kind: input, shape index: {}]
  %s3 = inlined_call_operand.vmem [shape: bf16[32,64], index: 3, kind: input, shape index: {}]
  %s4 = inlined_call_operand.vmem [shape: f32[32,1], index: 4, kind: input, shape index: {}]
  %s5 = inlined_call_operand.hbm [shape: f32[32,128], index: 5, kind: output, shape index: {}]
  %s6 = sld [smem:[#allocation0]]
  $region30: #{tpu_custom_call.1} parent=0
    _
  %s8 = ssub.s32 1, %s6
  %s9 = scalar_select 0, %s8, %s6
  $region1: #{tpu_custom_call.1} parent=0
    #allocation2 [shape = 'u8[16384]{0}', space=vmem, size = 0x4000, scoped, tag = 'output window, operand 0, single buffered']
    #allocation3 [shape = 's32[1]{0}', space=sflag, size = 0x4, scoped, tag = 'scoped memory for tpu_custom_call.1']
    %10 = vsyncpa [#allocation3], 0
    // Predicated region
    $region2: #{tpu_custom_call.1} parent=1 // pred_check
      _
    $region3: #{tpu_custom_call.1} parent=1 // pred_check_branch
      %12 = sbr.rel (0) target = $region5
    $region4: #{tpu_custom_call.1} parent=1 // pred_region
      _
    $region5: #{tpu_custom_call.1} parent=1 // pred_fallthru
      _
    // Predicated region
    $region6: #{tpu_custom_call.1} parent=1 // pred_check
      _
    $region7: #{tpu_custom_call.1} parent=1 // pred_check_branch
      %14 = sbr.rel (0) target = $region9
    $region8: #{tpu_custom_call.1} parent=1 // pred_region
      _
    $region9: #{tpu_custom_call.1} parent=1 // pred_fallthru
      _
    // Predicated region
    $region10: #{tpu_custom_call.1} parent=1 // pred_check
      _
    $region11: #{tpu_custom_call.1} parent=1 // pred_check_branch
      %16 = sbr.rel (0) target = $region13
    $region12: #{tpu_custom_call.1} parent=1 // pred_region
      _
    $region13: #{tpu_custom_call.1} parent=1 // pred_fallthru
      _
    // Predicated region
    $region14: #{tpu_custom_call.1} parent=1 // pred_check
      _
    $region15: #{tpu_custom_call.1} parent=1 // pred_check_branch
      %18 = sbr.rel (0) target = $region17
    $region16: #{tpu_custom_call.1} parent=1 // pred_region
      _
    $region17: #{tpu_custom_call.1} parent=1 // pred_fallthru
      _
    // Predicated region
    $region18: #{tpu_custom_call.1} parent=1 // pred_check
      _
    $region19: #{tpu_custom_call.1} parent=1 // pred_check_branch
      %20 = sbr.rel (0) target = $region21
    $region20: #{tpu_custom_call.1} parent=1 // pred_region
      _
    $region21: #{tpu_custom_call.1} parent=1 // pred_fallthru
      _
    %v22 = vld [vmem:[%s0] sm:$0xf]
    %v23 = vld [vmem:[%s0 + $0x4] sm:$0xf]
    %v24 = vld [vmem:[%s0 + $0x8] sm:$0xf]
    %v25 = vld [vmem:[%s0 + $0xc] sm:$0xf]
    %v26 = vld [vmem:[%s1] sm:$0xf]
    %v27 = vld [vmem:[%s1 + $0x4] sm:$0xf]
    %v28 = vld [vmem:[%s1 + $0x8] sm:$0xf]
    %v29 = vld [vmem:[%s1 + $0xc] sm:$0xf]
    %v30 = vld [vmem:[%s1 + $0x10] sm:$0xf]
    %v31 = vld [vmem:[%s1 + $0x14] sm:$0xf]
    %v32 = vld [vmem:[%s1 + $0x18] sm:$0xf]
    %v33 = vld [vmem:[%s1 + $0x1c] sm:$0xf]
    %v34 = vld [vmem:[%s2] sm:$0xff]
    %v35 = vld [vmem:[%s2 + $0x8] sm:$0xff]
    %v36 = vld [vmem:[%s2 + $0x10] sm:$0xff]
    %v37 = vld [vmem:[%s2 + $0x18] sm:$0xff]
    %v38 = vld [vmem:[%s2 + $0x20] sm:$0xff]
    %v39 = vld [vmem:[%s2 + $0x28] sm:$0xff]
    %v40 = vld [vmem:[%s2 + $0x30] sm:$0xff]
    %v41 = vld [vmem:[%s2 + $0x38] sm:$0xff]
    %43 = vset.pattern.permute.xlu0 0
    %44 = vperm.xlu0 %43, %v34
    %v45 = vpop.permute.xlu0 %44
    %48 = vset.pattern.permute.xlu0 0
    %49 = vperm.xlu0 %48, %v35
    %v50 = vpop.permute.xlu0 %49
    %53 = vset.pattern.permute.xlu0 0
    %54 = vperm.xlu0 %53, %v36
    %v55 = vpop.permute.xlu0 %54
    %58 = vset.pattern.permute.xlu0 0
    %59 = vperm.xlu0 %58, %v37
    %v60 = vpop.permute.xlu0 %59
    %63 = vset.pattern.permute.xlu0 0
    %64 = vperm.xlu0 %63, %v38
    %v65 = vpop.permute.xlu0 %64
    %68 = vset.pattern.permute.xlu0 0
    %69 = vperm.xlu0 %68, %v39
    %v70 = vpop.permute.xlu0 %69
    %73 = vset.pattern.permute.xlu0 0
    %74 = vperm.xlu0 %73, %v40
    %v75 = vpop.permute.xlu0 %74
    %78 = vset.pattern.permute.xlu0 0
    %79 = vperm.xlu0 %78, %v41
    %v80 = vpop.permute.xlu0 %79
    %v90 = vunpack.c.l.b16 %v26
    %v91 = vunpack.c.l.b16 %v27
    %v92 = vunpack.c.l.b16 %v28
    %v93 = vunpack.c.l.b16 %v29
    %v94 = vunpack.c.l.b16 %v30
    %v95 = vunpack.c.l.b16 %v31
    %v96 = vunpack.c.l.b16 %v32
    %v97 = vunpack.c.l.b16 %v33
    %v98 = vpack.c.b16 %v91, %v90
    %v99 = vpack.c.b16 %v93, %v92
    %v100 = vpack.c.b16 %v95, %v94
    %v101 = vpack.c.b16 %v97, %v96
    %v106 = vunpack.c.l.b16 %v22
    %v107 = vunpack.c.l.b16 %v23
    %v108 = vunpack.c.l.b16 %v24
    %v109 = vunpack.c.l.b16 %v25
    %v110 = vpack.c.b16 %v107, %v106
    %v111 = vpack.c.b16 %v109, %v108
    %vm114 = vcmask 261120
    %v116 = vsel %vm114, %v98, 0
    %v119 = vsel %vm114, %v99, 0
    %v122 = vsel %vm114, %v100, 0
    %v125 = vsel %vm114, %v101, 0
    %127 = vmatprep.subr.bf16.mxu0 0
    %128 = vmatpush1.bf16.msra.mxu0 %v110
    %129 = vmatprep.subr.bf16.mxu0 0
    %130 = vmatpush1.bf16.msra.mxu0 %v111
    %131 = vmatprep.subr.bf16.mxu0 0
    %132 = vmatpush1.bf16.msra.mxu0 0
    %133 = vmatprep.subr.bf16.mxu0 0
    %134 = vmatpush1.bf16.msra.mxu0 0
    %135 = vmatprep.subr.bf16.mxu0 0
    %136 = vmatpush1.bf16.msra.mxu0 0
    %137 = vmatprep.subr.bf16.mxu0 0
    %138 = vmatpush1.bf16.msra.mxu0 0
    %139 = vmatprep.subr.bf16.mxu0 0
    %140 = vmatpush1.bf16.msra.mxu0 0
    %141 = vmatprep.subr.bf16.mxu0 0
    %142 = vmatpush1.bf16.msra.mxu0 0
    %143 = vmatprep.subr.bf16.mxu0 0
    %144 = vmatpush1.bf16.msra.mxu0 0
    %145 = vmatprep.subr.bf16.mxu0 0
    %146 = vmatpush1.bf16.msra.mxu0 0
    %147 = vmatprep.subr.bf16.mxu0 0
    %148 = vmatpush1.bf16.msra.mxu0 0
    %149 = vmatprep.subr.bf16.mxu0 0
    %150 = vmatpush1.bf16.msra.mxu0 0
    %151 = vmatprep.subr.bf16.mxu0 0
    %152 = vmatpush1.bf16.msra.mxu0 0
    %153 = vmatprep.subr.bf16.mxu0 0
    %154 = vmatpush1.bf16.msra.mxu0 0
    %155 = vmatprep.subr.bf16.mxu0 0
    %156 = vmatpush1.bf16.msra.mxu0 0
    %157 = vmatprep.subr.bf16.mxu0 0
    %158 = vmatpush1.bf16.msra.mxu0 0
    %159 = vmatprep.mubr.bf16.mxu0 0
    %160 = vmatmul.mubr.bf16.gmra.mrb[0].mxu0 %v116
    %v161 = vpop.f32.mrb[0].mxu0
    %v162 = vadd.f32 %v45, %v161
    %v163 = vpop.f32.mrb[0].mxu0
    %v164 = vpop.f32.mrb[0].mxu0
    %v165 = vadd.f32 %v50, %v164
    %v166 = vpop.f32.mrb[0].mxu0
    %167 = vmatprep.mubr.bf16.mxu0 0
    %168 = vmatmul.mubr.bf16.gmra.mrb[0].mxu0 %v119
    %v169 = vpop.f32.mrb[0].mxu0
    %v170 = vadd.f32 %v55, %v169
    %v171 = vpop.f32.mrb[0].mxu0
    %v172 = vpop.f32.mrb[0].mxu0
    %v173 = vadd.f32 %v60, %v172
    %v174 = vpop.f32.mrb[0].mxu0
    %175 = vmatprep.mubr.bf16.mxu0 0
    %176 = vmatmul.mubr.bf16.gmra.mrb[0].mxu0 %v122
    %v177 = vpop.f32.mrb[0].mxu0
    %v178 = vadd.f32 %v65, %v177
    %v179 = vpop.f32.mrb[0].mxu0
    %v180 = vpop.f32.mrb[0].mxu0
    %v181 = vadd.f32 %v70, %v180
    %v182 = vpop.f32.mrb[0].mxu0
    %183 = vmatprep.mubr.bf16.mxu0 0
    %184 = vmatmul.mubr.bf16.gmra.mrb[0].mxu0 %v125
    %v185 = vpop.f32.mrb[0].mxu0
    %v186 = vadd.f32 %v75, %v185
    %v187 = vpop.f32.mrb[0].mxu0
    %v188 = vpop.f32.mrb[0].mxu0
    %v189 = vadd.f32 %v80, %v188
    %v190 = vpop.f32.mrb[0].mxu0
    %191 = vdwg.mxu0
    %v192 = vmax.f32 %v162, 0.0
    %v193 = vmax.f32 %v165, 0.0
    %v194 = vmax.f32 %v170, 0.0
    %v195 = vmax.f32 %v173, 0.0
    %v196 = vmax.f32 %v178, 0.0
    %v197 = vmax.f32 %v181, 0.0
    %v198 = vmax.f32 %v186, 0.0
    %v199 = vmax.f32 %v189, 0.0
    %v200 = vld [vmem:[%s3] sm:$0xf]
    %v201 = vld [vmem:[%s3 + $0x4] sm:$0xf]
    %v202 = vld [vmem:[%s3 + $0x8] sm:$0xf]
    %v203 = vld [vmem:[%s3 + $0xc] sm:$0xf]
    %v204 = vpack.c.bf16 %v193, %v192
    %v205 = vpack.c.bf16 %v195, %v194
    %v206 = vpack.c.bf16 %v197, %v196
    %v207 = vpack.c.bf16 %v199, %v198
    %v208 = vld [vmem:[%s4] sm:$0xff]
    %v209 = vld [vmem:[%s4 + $0x8] sm:$0xff]
    %v210 = vld [vmem:[%s4 + $0x10] sm:$0xff]
    %v211 = vld [vmem:[%s4 + $0x18] sm:$0xff]
    %213 = vset.pattern.permute.xlu0 0
    %214 = vperm.xlu0 %213, %v208
    %v215 = vpop.permute.xlu0 %214
    %218 = vset.pattern.permute.xlu0 0
    %219 = vperm.xlu0 %218, %v209
    %v220 = vpop.permute.xlu0 %219
    %223 = vset.pattern.permute.xlu0 0
    %224 = vperm.xlu0 %223, %v210
    %v225 = vpop.permute.xlu0 %224
    %228 = vset.pattern.permute.xlu0 0
    %229 = vperm.xlu0 %228, %v211
    %v230 = vpop.permute.xlu0 %229
    %v236 = vunpack.c.l.b16 %v200
    %v237 = vunpack.c.l.b16 %v201
    %v238 = vunpack.c.l.b16 %v202
    %v239 = vunpack.c.l.b16 %v203
    %v240 = vpack.c.b16 %v237, %v236
    %v241 = vpack.c.b16 %v239, %v238
    %vm242 = vcmask 523264
    %v244 = vsel %vm242, %v240, 0
    %v247 = vsel %vm242, %v241, 0
    %249 = vmatprep.subr.bf16.mxu0 0
    %250 = vmatpush1.bf16.msra.mxu0 %v204
    %251 = vmatprep.subr.bf16.mxu0 0
    %252 = vmatpush1.bf16.msra.mxu0 %v205
    %253 = vmatprep.subr.bf16.mxu0 0
    %254 = vmatpush1.bf16.msra.mxu0 %v206
    %255 = vmatprep.subr.bf16.mxu0 0
    %256 = vmatpush1.bf16.msra.mxu0 %v207
    %257 = vmatprep.subr.bf16.mxu0 0
    %258 = vmatpush1.bf16.msra.mxu0 0
    %259 = vmatprep.subr.bf16.mxu0 0
    %260 = vmatpush1.bf16.msra.mxu0 0
    %261 = vmatprep.subr.bf16.mxu0 0
    %262 = vmatpush1.bf16.msra.mxu0 0
    %263 = vmatprep.subr.bf16.mxu0 0
    %264 = vmatpush1.bf16.msra.mxu0 0
    %265 = vmatprep.subr.bf16.mxu0 0
    %266 = vmatpush1.bf16.msra.mxu0 0
    %267 = vmatprep.subr.bf16.mxu0 0
    %268 = vmatpush1.bf16.msra.mxu0 0
    %269 = vmatprep.subr.bf16.mxu0 0
    %270 = vmatpush1.bf16.msra.mxu0 0
    %271 = vmatprep.subr.bf16.mxu0 0
    %272 = vmatpush1.bf16.msra.mxu0 0
    %273 = vmatprep.subr.bf16.mxu0 0
    %274 = vmatpush1.bf16.msra.mxu0 0
    %275 = vmatprep.subr.bf16.mxu0 0
    %276 = vmatpush1.bf16.msra.mxu0 0
    %277 = vmatprep.subr.bf16.mxu0 0
    %278 = vmatpush1.bf16.msra.mxu0 0
    %279 = vmatprep.subr.bf16.mxu0 0
    %280 = vmatpush1.bf16.msra.mxu0 0
    %281 = vmatprep.mubr.bf16.mxu0 0
    %282 = vmatmul.mubr.bf16.gmra.mrb[0].mxu0 %v244
    %v283 = vpop.f32.mrb[0].mxu0
    %v284 = vadd.f32 %v215, %v283
    %v285 = vpop.f32.mrb[0].mxu0
    %v286 = vpop.f32.mrb[0].mxu0
    %v287 = vadd.f32 %v220, %v286
    %v288 = vpop.f32.mrb[0].mxu0
    %289 = vmatprep.mubr.bf16.mxu0 0
    %290 = vmatmul.mubr.bf16.gmra.mrb[0].mxu0 %v247
    %v291 = vpop.f32.mrb[0].mxu0
    %v292 = vadd.f32 %v225, %v291
    %v293 = vpop.f32.mrb[0].mxu0
    %v294 = vpop.f32.mrb[0].mxu0
    %v295 = vadd.f32 %v230, %v294
    %v296 = vpop.f32.mrb[0].mxu0
    %297 = vdwg.mxu0
    %298 = vst [vmem:[#allocation2] sm:$0xff] %v284
    %299 = vst [vmem:[#allocation2 + $0x8] sm:$0xff] %v287
    %300 = vst [vmem:[#allocation2 + $0x10] sm:$0xff] %v292
    %301 = vst [vmem:[#allocation2 + $0x18] sm:$0xff] %v295
    // Predicated region
    $region22: #{tpu_custom_call.1} parent=1 // pred_check
      _
    $region23: #{tpu_custom_call.1} parent=1 // pred_check_branch
      %303 = sbr.rel (0) target = $region25
    $region24: #{tpu_custom_call.1} parent=1 // pred_region
      %s305 = ssub.s32 512, 512
      %306 = vsyncadd [#allocation3], %s305
      %s307 = sshll.u32 [#allocation2], 4
      %s308 = int_to_ptr.vmem [resolvable:$true] %s307
      %313 = dma.vmem_to_hbm [thread:$0]  %s308, 512, %s5, [#allocation3], 128, 128, 8
    $region25: #{tpu_custom_call.1} parent=1 // pred_fallthru
      _
    // Predicated region
    $region26: #{tpu_custom_call.1} parent=1 // pred_check
      _
    $region27: #{tpu_custom_call.1} parent=1 // pred_check_branch
      %315 = sbr.rel (0) target = $region29
    $region28: #{tpu_custom_call.1} parent=1 // pred_region
      %316 = dma.done [#allocation3], 512
    $region29: #{tpu_custom_call.1} parent=1 // pred_fallthru
      _
    %317 = vsyncpa [#allocation3], 1

</llo_original>
